<compile_context>
chip_gen: v5e
topology: v5e:2x2
jax: 0.10.0
libtpu: 0.0.40
codegen_flags: <defaults>
</compile_context>

<pallas_src>
import jax
import jax.numpy as jnp
from jax.experimental import pallas as pl
from jax.experimental.pallas import tpu as pltpu

EPS = 1e-6


def _round_up(n, m):
    return ((n + m - 1) // m) * m


def _vmem_capacity_bytes():
    """Per-core VMEM capacity; conservative 64 MiB (v7x TC) if unavailable."""
    try:
        cap = int(pltpu.get_tpu_info().vmem_capacity_bytes)
        if cap > 0:
            return cap
    except Exception:
        pass
    return 64 << 20


def _choose_tiling(rows, target_rows, tm_cap):
    """Pick a row tile (multiple of 8, <= budget cap) and the padded row count.

    Prefers exact tilings (no wrapper pad/slice beyond 8-row alignment) and
    splits the work into >= 2 blocks when possible so both v7x TensorCores
    get a block under the "parallel" grid axis.
    """
    tm_cap = max(8, (tm_cap // 8) * 8)
    target = max(8, min((target_rows // 8) * 8, tm_cap))
    rows8 = _round_up(rows, 8)
    if rows8 <= target:
        if rows8 >= 16:                       # split in two so 2 TCs get work
            tm = _round_up(rows8 // 2, 8)
            return tm, _round_up(rows8, tm)
        return rows8, rows8
    # Largest multiple-of-8 divisor of rows8 that is <= target -> exact tiling.
    best = 8
    for cand in range(target, 7, -8):
        if rows8 % cand == 0:
            best = cand
            break
    if best >= target // 2:
        return best, rows8
    # Degenerate divisor structure -> pad to the target tile.
    return target, _round_up(rows8, target)


def _pick_tn(d, target):
    """Largest multiple-of-128 divisor of d that is <= target (d % 128 == 0)."""
    best = 128
    t = (min(max(target, 128), d) // 128) * 128
    for cand in range(t, 127, -128):
        if d % cand == 0:
            best = cand
            break
    return best


# ----------------------------------------------------------------------------
# Kernels
# ----------------------------------------------------------------------------
def _subconn_whole_kernel(x_ref, a2_ref, b2_ref, w_ref, bw_ref, o_ref):
    """Whole-D path: LN + Linear(D, D) + residual for a (tm, D) row tile."""
    x = x_ref[...].astype(jnp.float32)                         # (tm, D)
    d = x.shape[-1]
    # LayerNorm, torch semantics (unbiased std, eps added to std). f32 stats.
    mean = jnp.mean(x, axis=-1, keepdims=True)
    diff = x - mean
    var_unb = jnp.sum(diff * diff, axis=-1, keepdims=True) * (1.0 / (d - 1))
    inv_std = pl.reciprocal(jnp.sqrt(var_unb) + EPS, approx=False)   # (tm, 1)
    normed = diff * (a2_ref[...] * inv_std) + b2_ref[...]
    # sublayer: Linear on the MXU, bf16 in / f32 accumulate.
    y = jnp.dot(normed.astype(jnp.bfloat16), w_ref[...],
                preferred_element_type=jnp.float32) + bw_ref[...]
    # dropout (eval -> identity) + residual.
    o_ref[...] = (x + y).astype(o_ref.dtype)


def _subconn_coltiled_kernel(x_full_ref, x_tile_ref, a2_ref, b2_ref, w_ref,
                             bw_ref, o_ref, normed_ref):
    """Large-D path: grid = (row tiles, N tiles); W streams in (D, tn) strips.

    LayerNorm is computed once per row tile (at the first N step) into a bf16
    VMEM scratch and reused for every weight strip.
    """
    @pl.when(pl.program_id(1) == 0)
    def _():
        x = x_full_ref[...].astype(jnp.float32)                 # (tm, D)
        d = x.shape[-1]
        mean = jnp.mean(x, axis=-1, keepdims=True)
        diff = x - mean
        var_unb = jnp.sum(diff * diff, axis=-1, keepdims=True) * (1.0 / (d - 1))
        inv_std = pl.reciprocal(jnp.sqrt(var_unb) + EPS, approx=False)
        normed_ref[...] = (diff * (a2_ref[...] * inv_std)
                           + b2_ref[...]).astype(jnp.bfloat16)

    y = jnp.dot(normed_ref[...], w_ref[...],
                preferred_element_type=jnp.float32) + bw_ref[...]
    o_ref[...] = (x_tile_ref[...].astype(jnp.float32) + y).astype(o_ref.dtype)


# ----------------------------------------------------------------------------
# Wrapper
# ----------------------------------------------------------------------------
def sublayer_connection(x, a2, b2, w, bw, *, tile_rows=512, col_tile=512,
                        force_col_tiling=False):
    B, S, D = x.shape
    rows = B * S
    xb = x.dtype.itemsize

    cap = _vmem_capacity_bytes()
    budget = max(cap - (8 << 20), 16 << 20)       # headroom for compiler scratch

    a2_2d = a2.reshape(1, D).astype(jnp.float32)
    b2_2d = b2.reshape(1, D).astype(jnp.float32)
    bw_2d = bw.reshape(1, D).astype(jnp.float32)
    w_bf16 = w.astype(jnp.bfloat16)               # halves weight VMEM + HBM DMA

    # Whole-D footprint (single-buffered weight): can we hold W and at least a
    # 128-row double-buffered in/out tile?  If not (and D is 128-aligned),
    # stream W in (D, tn) strips instead.
    w_bytes = D * D * 2
    param_bytes = 3 * D * 4
    per_row_whole = 4 * D * xb                    # 2x in tile + 2x out tile
    whole_fits = (budget - w_bytes - param_bytes) >= 128 * per_row_whole
    use_col_tiling = (D % 128 == 0) and (force_col_tiling or not whole_fits)
    # TODO(synk): a huge D that is not 128-aligned would need a padded feature
    # dim for the column-tiled path; the model-level D is assumed 128-aligned.

    x2 = x.reshape(rows, D)

    def _run(single_buffer):
        # Single-buffer grid-invariant operands (index_map is constant, so they
        # are only fetched once anyway; double-buffering just doubles VMEM).
        inv = {"pipeline_mode": pl.Buffered(1)} if single_buffer else {}

        if not use_col_tiling:
            w_res = w_bytes * (1 if single_buffer else 2)
            avail = budget - w_res - param_bytes
            tm_cap = max(8, avail // per_row_whole)
            tm, rows_p = _choose_tiling(rows, tile_rows, tm_cap)
            xp = x2 if rows_p == rows else jnp.pad(x2, ((0, rows_p - rows), (0, 0)))
            footprint = w_res + param_bytes + tm * per_row_whole + (4 << 20)
            vmem_limit = int(min(cap - (2 << 20), max(footprint, 32 << 20)))

            out = pl.pallas_call(
                _subconn_whole_kernel,
                out_shape=jax.ShapeDtypeStruct((rows_p, D), x.dtype),
                grid=(rows_p // tm,),
                in_specs=[
                    pl.BlockSpec((tm, D), lambda i: (i, 0)),          # x rows
                    pl.BlockSpec((1, D), lambda i: (0, 0), **inv),    # a_2
                    pl.BlockSpec((1, D), lambda i: (0, 0), **inv),    # b_2
                    pl.BlockSpec((D, D), lambda i: (0, 0), **inv),    # W (bf16)
                    pl.BlockSpec((1, D), lambda i: (0, 0), **inv),    # bias
                ],
                out_specs=pl.BlockSpec((tm, D), lambda i: (i, 0)),
                compiler_params=pltpu.CompilerParams(
                    dimension_semantics=("parallel",),
                    vmem_limit_bytes=vmem_limit,
                ),
            )(xp, a2_2d, b2_2d, w_bf16, bw_2d)
        else:
            tn = _pick_tn(D, col_tile)
            w_blk = 2 * D * tn * 2                 # double-buffered bf16 strips
            bias_blk = 2 * tn * 4
            p_bytes = 2 * D * 4                    # a_2 / b_2
            per_row = 2 * D * xb + 4 * tn * xb + D * 2   # x_full + x/out strips + scratch
            avail = budget - w_blk - bias_blk - p_bytes
            tm_cap = max(8, avail // per_row)
            tm, rows_p = _choose_tiling(rows, tile_rows, tm_cap)
            xp = x2 if rows_p == rows else jnp.pad(x2, ((0, rows_p - rows), (0, 0)))
            footprint = w_blk + bias_blk + p_bytes + tm * per_row + (4 << 20)
            vmem_limit = int(min(cap - (2 << 20), max(footprint, 32 << 20)))

            out = pl.pallas_call(
                _subconn_coltiled_kernel,
                out_shape=jax.ShapeDtypeStruct((rows_p, D), x.dtype),
                grid=(rows_p // tm, D // tn),
                in_specs=[
                    pl.BlockSpec((tm, D), lambda i, j: (i, 0)),        # x (LN rows)
                    pl.BlockSpec((tm, tn), lambda i, j: (i, j)),       # x (residual strip)
                    pl.BlockSpec((1, D), lambda i, j: (0, 0), **inv),  # a_2
                    pl.BlockSpec((1, D), lambda i, j: (0, 0), **inv),  # b_2
                    pl.BlockSpec((D, tn), lambda i, j: (0, j)),        # W strips (bf16)
                    pl.BlockSpec((1, tn), lambda i, j: (0, j)),        # bias strip
                ],
                out_specs=pl.BlockSpec((tm, tn), lambda i, j: (i, j)),
                scratch_shapes=[pltpu.VMEM((tm, D), jnp.bfloat16)],    # normed(x)
                compiler_params=pltpu.CompilerParams(
                    dimension_semantics=("parallel", "arbitrary"),
                    vmem_limit_bytes=vmem_limit,
                ),
            )(xp, xp, a2_2d, b2_2d, w_bf16, bw_2d)

        if rows_p != rows:
            out = out[:rows]      # zero-padded tail rows are finite and discarded
        return out.reshape(B, S, D)

    try:
        return _run(single_buffer=True)
    except Exception:
        # pipeline_mode=pl.Buffered(1) not supported on this jax build ->
        # fall back to default double-buffering (costs only VMEM headroom).
        return _run(single_buffer=False)


# ----------------------------------------------------------------------------
# Reference + demo
# ----------------------------------------------------------------------------
def _reference(x, a2, b2, w, bw):
    x32 = x.astype(jnp.float32)
    D = x.shape[-1]
    mean = jnp.mean(x32, axis=-1, keepdims=True)
    diff = x32 - mean
    std = jnp.sqrt(jnp.sum(diff * diff, axis=-1, keepdims=True) / (D - 1))
    normed = a2 * diff / (std + EPS) + b2
    return x32 + (normed @ w + bw)


if __name__ == "__main__":
    key = jax.random.PRNGKey(0)
    kx, kw, kb, kx2, kw2, kb2 = jax.random.split(key, 6)

    # --- case 1: module-like small shape (size=32), whole-D path, ragged rows
    B, S, D = 2, 9, 32
    x = jax.random.normal(kx, (B, S, D), dtype=jnp.float32)
    a2 = jnp.ones((D,), dtype=jnp.float32)        # LayerNorm params as in __init__
    b2 = jnp.zeros((D,), dtype=jnp.float32)
    w = jax.random.normal(kw, (D, D), dtype=jnp.float32) * 0.05   # synthetic sublayer
    bw = jax.random.normal(kb, (D,), dtype=jnp.float32) * 0.05

    out = jax.block_until_ready(sublayer_connection(x, a2, b2, w, bw))
    ref = _reference(x, a2, b2, w, bw)
    assert out.shape == ref.shape
    assert bool(jnp.all(jnp.isfinite(out)))
    assert jnp.allclose(out, ref, atol=3e-2, rtol=3e-2), "whole-D path mismatch"

    # --- case 2: 128-aligned D, forced column-tiled (large-D / v7x) path -----
    B2, S2, D2 = 2, 16, 256
    x_l = jax.random.normal(kx2, (B2, S2, D2), dtype=jnp.float32)
    a2_l = jnp.ones((D2,), dtype=jnp.float32)
    b2_l = jnp.zeros((D2,), dtype=jnp.float32)
    w_l = jax.random.normal(kw2, (D2, D2), dtype=jnp.float32) * 0.05
    bw_l = jax.random.normal(kb2, (D2,), dtype=jnp.float32) * 0.05

    out_l = jax.block_until_ready(
        sublayer_connection(x_l, a2_l, b2_l, w_l, bw_l,
                            force_col_tiling=True, col_tile=128))
    ref_l = _reference(x_l, a2_l, b2_l, w_l, bw_l)
    assert out_l.shape == ref_l.shape
    assert bool(jnp.all(jnp.isfinite(out_l)))
    assert jnp.allclose(out_l, ref_l, atol=3e-2, rtol=3e-2), "col-tiled path mismatch"

    # TODO(synk): training-mode dropout (RNG mask via pltpu.prng_*) is not
    # implemented; eval-mode identity matches the module's inference behavior.
    print("KERNEL_OK")
</pallas_src>

<mosaic_0001>
module attributes {stable_mosaic.version = 11 : i64} {
  func.func @_subconn_whole_kernel(%arg0: i32, %arg1: memref<16x32xf32, #tpu.memory_space<vmem>>, %arg2: memref<1x32xf32, #tpu.memory_space<vmem>>, %arg3: memref<1x32xf32, #tpu.memory_space<vmem>>, %arg4: memref<32x32xbf16, #tpu.memory_space<vmem>>, %arg5: memref<1x32xf32, #tpu.memory_space<vmem>>, %arg6: memref<16x32xf32, #tpu.memory_space<vmem>>) attributes {dimension_semantics = [#tpu.dimension_semantics<parallel>], iteration_bounds = array<i64: 2>, scalar_prefetch = 0 : i64, scratch_operands = 0 : i64, tpu.core_type = #tpu.core_type<tc>, window_params = [{transform_indices = @transform_0, window_bounds = array<i64: 16, 32>}, {pipeline_mode = #tpu.pipeline_mode<synchronous>, transform_indices = @transform_1, window_bounds = array<i64: 1, 32>}, {pipeline_mode = #tpu.pipeline_mode<synchronous>, transform_indices = @transform_2, window_bounds = array<i64: 1, 32>}, {pipeline_mode = #tpu.pipeline_mode<synchronous>, transform_indices = @transform_3, window_bounds = array<i64: 32, 32>}, {pipeline_mode = #tpu.pipeline_mode<synchronous>, transform_indices = @transform_4, window_bounds = array<i64: 1, 32>}, {transform_indices = @transform_5, window_bounds = array<i64: 16, 32>}]} {
    %c0 = arith.constant 0 : index
    %c0_0 = arith.constant 0 : index
    %0 = vector.load %arg1[%c0, %c0_0] : memref<16x32xf32, #tpu.memory_space<vmem>>, vector<16x32xf32>
    %cst = arith.constant dense<0.000000e+00> : vector<16xf32>
    %1 = vector.multi_reduction <add>, %0, %cst [1] : vector<16x32xf32> to vector<16xf32>
    %2 = vector.shape_cast %1 : vector<16xf32> to vector<16x1xf32>
    %cst_1 = arith.constant 3.200000e+01 : f32
    %3 = vector.broadcast %cst_1 : f32 to vector<16x1xf32>
    %4 = arith.divf %2, %3 : vector<16x1xf32>
    %5 = vector.broadcast %4 : vector<16x1xf32> to vector<16x32xf32>
    %6 = arith.subf %0, %5 : vector<16x32xf32>
    %7 = arith.mulf %6, %6 : vector<16x32xf32>
    %cst_2 = arith.constant dense<0.000000e+00> : vector<16xf32>
    %8 = vector.multi_reduction <add>, %7, %cst_2 [1] : vector<16x32xf32> to vector<16xf32>
    %9 = vector.shape_cast %8 : vector<16xf32> to vector<16x1xf32>
    %cst_3 = arith.constant 0.0322580636 : f32
    %10 = vector.broadcast %cst_3 : f32 to vector<16x1xf32>
    %11 = arith.mulf %9, %10 : vector<16x1xf32>
    %12 = math.sqrt %11 : vector<16x1xf32>
    %cst_4 = arith.constant 9.99999997E-7 : f32
    %13 = vector.broadcast %cst_4 : f32 to vector<16x1xf32>
    %14 = arith.addf %12, %13 : vector<16x1xf32>
    %15 = tpu.reciprocal %14 : vector<16x1xf32> -> vector<16x1xf32>
    %c0_5 = arith.constant 0 : index
    %c0_6 = arith.constant 0 : index
    %16 = vector.load %arg2[%c0_5, %c0_6] : memref<1x32xf32, #tpu.memory_space<vmem>>, vector<1x32xf32>
    %17 = vector.broadcast %16 : vector<1x32xf32> to vector<16x32xf32>
    %18 = vector.broadcast %15 : vector<16x1xf32> to vector<16x32xf32>
    %19 = arith.mulf %17, %18 : vector<16x32xf32>
    %20 = arith.mulf %6, %19 : vector<16x32xf32>
    %c0_7 = arith.constant 0 : index
    %c0_8 = arith.constant 0 : index
    %21 = vector.load %arg3[%c0_7, %c0_8] : memref<1x32xf32, #tpu.memory_space<vmem>>, vector<1x32xf32>
    %22 = vector.broadcast %21 : vector<1x32xf32> to vector<16x32xf32>
    %23 = arith.addf %20, %22 : vector<16x32xf32>
    %24 = arith.truncf %23 : vector<16x32xf32> to vector<16x32xbf16>
    %c0_9 = arith.constant 0 : index
    %c0_10 = arith.constant 0 : index
    %25 = vector.load %arg4[%c0_9, %c0_10] : memref<32x32xbf16, #tpu.memory_space<vmem>>, vector<32x32xbf16>
    %cst_11 = arith.constant dense<0.000000e+00> : vector<16x32xf32>
    %26 = tpu.matmul %24, %25, %cst_11 {dimension_numbers = #tpu.dot_dimension_numbers<[1], [0], [0], [1], [0, 0, 1, 1], [], []>} : vector<16x32xbf16>, vector<32x32xbf16>, vector<16x32xf32> -> vector<16x32xf32>
    %c0_12 = arith.constant 0 : index
    %c0_13 = arith.constant 0 : index
    %27 = vector.load %arg5[%c0_12, %c0_13] : memref<1x32xf32, #tpu.memory_space<vmem>>, vector<1x32xf32>
    %28 = vector.broadcast %27 : vector<1x32xf32> to vector<16x32xf32>
    %29 = arith.addf %26, %28 : vector<16x32xf32>
    %30 = arith.addf %0, %29 : vector<16x32xf32>
    %c0_14 = arith.constant 0 : index
    %c0_15 = arith.constant 0 : index
    %31 = vector.load %arg6[%c0_14, %c0_15] : memref<16x32xf32, #tpu.memory_space<vmem>>, vector<16x32xf32>
    tpu.vector_store %arg6[%c0_14, %c0_15], %30 {strides = array<i32>} : memref<16x32xf32, #tpu.memory_space<vmem>>, vector<16x32xf32>,
    return
  }
  func.func @transform_0(%arg0: i32) -> (i32, i32) {
    %c0_i32 = arith.constant 0 : i32
    %c0_i32_0 = arith.constant 0 : i32
    return %arg0, %c0_i32 : i32, i32
  }
  func.func @transform_1(%arg0: i32) -> (i32, i32) {
    %c0_i32 = arith.constant 0 : i32
    %c0_i32_0 = arith.constant 0 : i32
    %c0_i32_1 = arith.constant 0 : i32
    return %c0_i32, %c0_i32_0 : i32, i32
  }
  func.func @transform_2(%arg0: i32) -> (i32, i32) {
    %c0_i32 = arith.constant 0 : i32
    %c0_i32_0 = arith.constant 0 : i32
    %c0_i32_1 = arith.constant 0 : i32
    return %c0_i32, %c0_i32_0 : i32, i32
  }
  func.func @transform_3(%arg0: i32) -> (i32, i32) {
    %c0_i32 = arith.constant 0 : i32
    %c0_i32_0 = arith.constant 0 : i32
    %c0_i32_1 = arith.constant 0 : i32
    return %c0_i32, %c0_i32_0 : i32, i32
  }
  func.func @transform_4(%arg0: i32) -> (i32, i32) {
    %c0_i32 = arith.constant 0 : i32
    %c0_i32_0 = arith.constant 0 : i32
    %c0_i32_1 = arith.constant 0 : i32
    return %c0_i32, %c0_i32_0 : i32, i32
  }
  func.func @transform_5(%arg0: i32) -> (i32, i32) {
    %c0_i32 = arith.constant 0 : i32
    %c0_i32_0 = arith.constant 0 : i32
    return %arg0, %c0_i32 : i32, i32
  }
}

module attributes {stable_mosaic.version = 11 : i64} {
  func.func @_subconn_whole_kernel(%arg0: i32, %arg1: memref<16x32xf32, #tpu.memory_space<vmem>>, %arg2: memref<1x32xf32, #tpu.memory_space<vmem>>, %arg3: memref<1x32xf32, #tpu.memory_space<vmem>>, %arg4: memref<32x32xbf16, #tpu.memory_space<vmem>>, %arg5: memref<1x32xf32, #tpu.memory_space<vmem>>, %arg6: memref<16x32xf32, #tpu.memory_space<vmem>>) attributes {dimension_semantics = [#tpu.dimension_semantics<parallel>], iteration_bounds = array<i64: 2>, scalar_prefetch = 0 : i64, scratch_operands = 0 : i64, tpu.core_type = #tpu.core_type<tc>, window_params = [{transform_indices = @transform_0, window_bounds = array<i64: 16, 32>}, {pipeline_mode = #tpu.pipeline_mode<synchronous>, transform_indices = @transform_1, window_bounds = array<i64: 1, 32>}, {pipeline_mode = #tpu.pipeline_mode<synchronous>, transform_indices = @transform_2, window_bounds = array<i64: 1, 32>}, {pipeline_mode = #tpu.pipeline_mode<synchronous>, transform_indices = @transform_3, window_bounds = array<i64: 32, 32>}, {pipeline_mode = #tpu.pipeline_mode<synchronous>, transform_indices = @transform_4, window_bounds = array<i64: 1, 32>}, {transform_indices = @transform_5, window_bounds = array<i64: 16, 32>}]} {
    %c0 = arith.constant 0 : index
    %c0_0 = arith.constant 0 : index
    %0 = vector.load %arg1[%c0, %c0_0] : memref<16x32xf32, #tpu.memory_space<vmem>>, vector<16x32xf32>
    %cst = arith.constant dense<0.000000e+00> : vector<16xf32>
    %1 = vector.multi_reduction <add>, %0, %cst [1] : vector<16x32xf32> to vector<16xf32>
    %2 = vector.shape_cast %1 : vector<16xf32> to vector<16x1xf32>
    %cst_1 = arith.constant 3.200000e+01 : f32
    %3 = vector.broadcast %cst_1 : f32 to vector<16x1xf32>
    %4 = arith.divf %2, %3 : vector<16x1xf32>
    %5 = vector.broadcast %4 : vector<16x1xf32> to vector<16x32xf32>
    %6 = arith.subf %0, %5 : vector<16x32xf32>
    %7 = arith.mulf %6, %6 : vector<16x32xf32>
    %cst_2 = arith.constant dense<0.000000e+00> : vector<16xf32>
    %8 = vector.multi_reduction <add>, %7, %cst_2 [1] : vector<16x32xf32> to vector<16xf32>
    %9 = vector.shape_cast %8 : vector<16xf32> to vector<16x1xf32>
    %cst_3 = arith.constant 0.0322580636 : f32
    %10 = vector.broadcast %cst_3 : f32 to vector<16x1xf32>
    %11 = arith.mulf %9, %10 : vector<16x1xf32>
    %12 = math.sqrt %11 : vector<16x1xf32>
    %cst_4 = arith.constant 9.99999997E-7 : f32
    %13 = vector.broadcast %cst_4 : f32 to vector<16x1xf32>
    %14 = arith.addf %12, %13 : vector<16x1xf32>
    %15 = tpu.reciprocal %14 : vector<16x1xf32> -> vector<16x1xf32>
    %c0_5 = arith.constant 0 : index
    %c0_6 = arith.constant 0 : index
    %16 = vector.load %arg2[%c0_5, %c0_6] : memref<1x32xf32, #tpu.memory_space<vmem>>, vector<1x32xf32>
    %17 = vector.broadcast %16 : vector<1x32xf32> to vector<16x32xf32>
    %18 = vector.broadcast %15 : vector<16x1xf32> to vector<16x32xf32>
    %19 = arith.mulf %17, %18 : vector<16x32xf32>
    %20 = arith.mulf %6, %19 : vector<16x32xf32>
    %c0_7 = arith.constant 0 : index
    %c0_8 = arith.constant 0 : index
    %21 = vector.load %arg3[%c0_7, %c0_8] : memref<1x32xf32, #tpu.memory_space<vmem>>, vector<1x32xf32>
    %22 = vector.broadcast %21 : vector<1x32xf32> to vector<16x32xf32>
    %23 = arith.addf %20, %22 : vector<16x32xf32>
    %24 = arith.truncf %23 : vector<16x32xf32> to vector<16x32xbf16>
    %c0_9 = arith.constant 0 : index
    %c0_10 = arith.constant 0 : index
    %25 = vector.load %arg4[%c0_9, %c0_10] : memref<32x32xbf16, #tpu.memory_space<vmem>>, vector<32x32xbf16>
    %cst_11 = arith.constant dense<0.000000e+00> : vector<16x32xf32>
    %26 = tpu.matmul %24, %25, %cst_11 {dimension_numbers = #tpu.dot_dimension_numbers<[1], [0], [0], [1], [0, 0, 1, 1], [], []>} : vector<16x32xbf16>, vector<32x32xbf16>, vector<16x32xf32> -> vector<16x32xf32>
    %c0_12 = arith.constant 0 : index
    %c0_13 = arith.constant 0 : index
    %27 = vector.load %arg5[%c0_12, %c0_13] : memref<1x32xf32, #tpu.memory_space<vmem>>, vector<1x32xf32>
    %28 = vector.broadcast %27 : vector<1x32xf32> to vector<16x32xf32>
    %29 = arith.addf %26, %28 : vector<16x32xf32>
    %30 = arith.addf %0, %29 : vector<16x32xf32>
    %c0_14 = arith.constant 0 : index
    %c0_15 = arith.constant 0 : index
    %31 = vector.load %arg6[%c0_14, %c0_15] : memref<16x32xf32, #tpu.memory_space<vmem>>, vector<16x32xf32>
    tpu.vector_store %arg6[%c0_14, %c0_15], %30 {strides = array<i32>} : memref<16x32xf32, #tpu.memory_space<vmem>>, vector<16x32xf32>,
    return
  }
  func.func @transform_0(%arg0: i32) -> (i32, i32) {
    %c0_i32 = arith.constant 0 : i32
    %c0_i32_0 = arith.constant 0 : i32
    return %arg0, %c0_i32 : i32, i32
  }
  func.func @transform_1(%arg0: i32) -> (i32, i32) {
    %c0_i32 = arith.constant 0 : i32
    %c0_i32_0 = arith.constant 0 : i32
    %c0_i32_1 = arith.constant 0 : i32
    return %c0_i32, %c0_i32_0 : i32, i32
  }
  func.func @transform_2(%arg0: i32) -> (i32, i32) {
    %c0_i32 = arith.constant 0 : i32
    %c0_i32_0 = arith.constant 0 : i32
    %c0_i32_1 = arith.constant 0 : i32
    return %c0_i32, %c0_i32_0 : i32, i32
  }
  func.func @transform_3(%arg0: i32) -> (i32, i32) {
    %c0_i32 = arith.constant 0 : i32
    %c0_i32_0 = arith.constant 0 : i32
    %c0_i32_1 = arith.constant 0 : i32
    return %c0_i32, %c0_i32_0 : i32, i32
  }
  func.func @transform_4(%arg0: i32) -> (i32, i32) {
    %c0_i32 = arith.constant 0 : i32
    %c0_i32_0 = arith.constant 0 : i32
    %c0_i32_1 = arith.constant 0 : i32
    return %c0_i32, %c0_i32_0 : i32, i32
  }
  func.func @transform_5(%arg0: i32) -> (i32, i32) {
    %c0_i32 = arith.constant 0 : i32
    %c0_i32_0 = arith.constant 0 : i32
    return %arg0, %c0_i32 : i32, i32
  }
}

</mosaic_0001>

<llo_original>
// kernel: tpu_custom_call.1
$region0: #{tpu_custom_call.1}
  #allocation0 [shape = 'u32[]', space=smem, size = 0x4, offset = 0x4, fixed_abs, tag = 'smem constant byte address 0x4 - core index']
  #allocation1 [shape = 'u32[72,128]{1,0:T(1,128)}', space=vmem, size = 0x9000, scoped, tag = 'internal scratch']
  %s0 = inlined_call_operand.hbm [shape: f32[32,32], index: 0, kind: input, shape index: {}]
  %s1 = inlined_call_operand.hbm [shape: f32[1,32], index: 1, kind: input, shape index: {}]
  %s2 = inlined_call_operand.vmem [shape: f32[1,32], index: 2, kind: input, shape index: {}]
  %s3 = inlined_call_operand.hbm [shape: bf16[32,32], index: 3, kind: input, shape index: {}]
  %s4 = inlined_call_operand.vmem [shape: f32[1,32], index: 4, kind: input, shape index: {}]
  %s5 = inlined_call_operand.hbm [shape: f32[32,32], index: 5, kind: output, shape index: {}]
  %s6 = sld [smem:[#allocation0]]
  $region65: #{tpu_custom_call.1} parent=0
    _
  %s8 = ssub.s32 1, %s6
  %s9 = scalar_select 0, %s8, %s6
  $region1: #{tpu_custom_call.1} parent=0
    #allocation2 [shape = 'u8[16384]{0}', space=vmem, size = 0x4000, scoped, tag = 'input window, operand 0']
    #allocation3 [shape = 's32[2]{0}', space=sflag, size = 0x8, scoped, tag = 'scoped memory for tpu_custom_call.1']
    #allocation4 [shape = 's32[2]{0}', space=sflag, size = 0x8, scoped, tag = 'scoped memory for tpu_custom_call.1']
    #allocation5 [shape = 'u8[512]{0}', space=vmem, size = 0x400, scoped, tag = 'input window, operand 1, single buffered']
    #allocation6 [shape = 's32[1]{0}', space=sflag, size = 0x4, scoped, tag = 'scoped memory for tpu_custom_call.1']
    #allocation7 [shape = 'u8[8192]{0}', space=vmem, size = 0x2000, scoped, tag = 'input window, operand 3, single buffered']
    #allocation8 [shape = 'u8[16384]{0}', space=vmem, size = 0x4000, scoped, tag = 'output window, operand 0']
    %10 = vsyncpa [#allocation3], 0
    %s11 = scalar_lea.sflag [#allocation3], 1
    %12 = vsyncpa %s11, 0
    %13 = vsyncpa [#allocation6], 0
    %14 = vsyncpa [#allocation4], 0
    %s15 = scalar_lea.sflag [#allocation4], 1
    %16 = vsyncpa %s15, 0
    loop: start=0, step=1, limit=4
    $region2: #{tpu_custom_call.1} parent=1 // loop_pre_header
      _
    $region3: #{tpu_custom_call.1} parent=1 // loop_header
      %s18 = sphi 0, %s22
      %p19 = scmp.ge.s32.totalorder %s18, 4
      %s28 = sphi 0, %s30
      %s31 = sphi 0, %s28
      %s32 = sphi 0, %s31
      %s48 = sphi 0, %s32
      %s52 = sphi 0, %s52
      %s54 = sphi 0, %s52
      %s55 = sphi 0, %s54
      %s69 = sphi 0, %s55
      %s73 = sphi 0, %s73
      %s75 = sphi 0, %s73
      %s76 = sphi 0, %s75
      %s90 = sphi 0, %s76
      %s94 = sphi 0, %s94
      %s96 = sphi 0, %s94
      %s97 = sphi 0, %s96
      %s111 = sphi 0, %s97
      %s115 = sphi 0, %s115
      %s117 = sphi 0, %s115
      %s118 = sphi 0, %s117
      %s132 = sphi 0, %s118
      %s138 = sphi 0, %s140
      %s141 = sphi 0, %s138
      %s142 = sphi 0, %s141
      %s158 = sphi 0, %s142
    $region4: #{tpu_custom_call.1} parent=1 // loop_header_branch
      %21 = sbr.rel (%p19) target = $region8
    $region5: #{tpu_custom_call.1} parent=1 // loop_body
      %s23 = ssub.s32 %s18, 1
      %s24 = ssub.s32 %s18, 2
      %s25 = sadd.s32 %s18, 1
      %s26 = ssub.s32 %s18, %s25
      %p27 = scmp.eq.s32.totalorder %s26, 0
      %s29 = sadd.s32 %s28, 1
      %s30 = scalar_select %p27, %s28, %s29
      %p33 = pneg %p27
      %p34 = scmp.eq.s32.totalorder %s18, 1
      %p35 = por %p33, %p34
      %p36 = scmp.ne.s32.totalorder %s28, %s31
      %p37 = scmp.eq.s32.totalorder %s18, 0
      %p38 = por %p36, %p37
      %p39 = scmp.ne.s32.totalorder %s28, %s31
      %p40 = scmp.eq.s32.totalorder %s23, 1
      %p41 = por %p39, %p40
      %p42 = scmp.ne.s32.totalorder %s31, %s32
      %p43 = scmp.eq.s32.totalorder %s23, 0
      %p44 = por %p42, %p43
      %p45 = scmp.ne.s32.totalorder %s31, %s32
      %p46 = scmp.eq.s32.totalorder %s24, 1
      %p47 = por %p45, %p46
      %p49 = scmp.ne.s32.totalorder %s32, %s48
      %p50 = scmp.eq.s32.totalorder %s24, 0
      %p51 = por %p49, %p50
      %s53 = sadd.s32 %s52, 1
      %p56 = scmp.eq.s32.totalorder %s18, 1
      %p57 = scmp.ne.s32.totalorder %s52, %s54
      %p58 = scmp.eq.s32.totalorder %s18, 0
      %p59 = por %p57, %p58
      %p60 = scmp.ne.s32.totalorder %s52, %s54
      %p61 = scmp.eq.s32.totalorder %s23, 1
      %p62 = por %p60, %p61
      %p63 = scmp.ne.s32.totalorder %s54, %s55
      %p64 = scmp.eq.s32.totalorder %s23, 0
      %p65 = por %p63, %p64
      %p66 = scmp.ne.s32.totalorder %s54, %s55
      %p67 = scmp.eq.s32.totalorder %s24, 1
      %p68 = por %p66, %p67
      %p70 = scmp.ne.s32.totalorder %s55, %s69
      %p71 = scmp.eq.s32.totalorder %s24, 0
      %p72 = por %p70, %p71
      %s74 = sadd.s32 %s73, 1
      %p77 = scmp.eq.s32.totalorder %s18, 1
      %p78 = scmp.ne.s32.totalorder %s73, %s75
      %p79 = scmp.eq.s32.totalorder %s18, 0
      %p80 = por %p78, %p79
      %p81 = scmp.ne.s32.totalorder %s73, %s75
      %p82 = scmp.eq.s32.totalorder %s23, 1
      %p83 = por %p81, %p82
      %p84 = scmp.ne.s32.totalorder %s75, %s76
      %p85 = scmp.eq.s32.totalorder %s23, 0
      %p86 = por %p84, %p85
      %p87 = scmp.ne.s32.totalorder %s75, %s76
      %p88 = scmp.eq.s32.totalorder %s24, 1
      %p89 = por %p87, %p88
      %p91 = scmp.ne.s32.totalorder %s76, %s90
      %p92 = scmp.eq.s32.totalorder %s24, 0
      %p93 = por %p91, %p92
      %s95 = sadd.s32 %s94, 1
      %p98 = scmp.eq.s32.totalorder %s18, 1
      %p99 = scmp.ne.s32.totalorder %s94, %s96
      %p100 = scmp.eq.s32.totalorder %s18, 0
      %p101 = por %p99, %p100
      %p102 = scmp.ne.s32.totalorder %s94, %s96
      %p103 = scmp.eq.s32.totalorder %s23, 1
      %p104 = por %p102, %p103
      %p105 = scmp.ne.s32.totalorder %s96, %s97
      %p106 = scmp.eq.s32.totalorder %s23, 0
      %p107 = por %p105, %p106
      %p108 = scmp.ne.s32.totalorder %s96, %s97
      %p109 = scmp.eq.s32.totalorder %s24, 1
      %p110 = por %p108, %p109
      %p112 = scmp.ne.s32.totalorder %s97, %s111
      %p113 = scmp.eq.s32.totalorder %s24, 0
      %p114 = por %p112, %p113
      %s116 = sadd.s32 %s115, 1
      %p119 = scmp.eq.s32.totalorder %s18, 1
      %p120 = scmp.ne.s32.totalorder %s115, %s117
      %p121 = scmp.eq.s32.totalorder %s18, 0
      %p122 = por %p120, %p121
      %p123 = scmp.ne.s32.totalorder %s115, %s117
      %p124 = scmp.eq.s32.totalorder %s23, 1
      %p125 = por %p123, %p124
      %p126 = scmp.ne.s32.totalorder %s117, %s118
      %p127 = scmp.eq.s32.totalorder %s23, 0
      %p128 = por %p126, %p127
      %p129 = scmp.ne.s32.totalorder %s117, %s118
      %p130 = scmp.eq.s32.totalorder %s24, 1
      %p131 = por %p129, %p130
      %p133 = scmp.ne.s32.totalorder %s118, %s132
      %p134 = scmp.eq.s32.totalorder %s24, 0
      %p135 = por %p133, %p134
      %s136 = ssub.s32 %s18, %s25
      %p137 = scmp.eq.s32.totalorder %s136, 0
      %s139 = sadd.s32 %s138, 1
      %s140 = scalar_select %p137, %s138, %s139
      %p143 = pneg %p137
      %p144 = scmp.eq.s32.totalorder %s18, 1
      %p145 = por %p143, %p144
      %p146 = scmp.ne.s32.totalorder %s138, %s141
      %p147 = scmp.eq.s32.totalorder %s18, 0
      %p148 = por %p146, %p147
      %p149 = scmp.ne.s32.totalorder %s138, %s141
      %p150 = scmp.eq.s32.totalorder %s23, 1
      %p151 = por %p149, %p150
      %p152 = scmp.ne.s32.totalorder %s141, %s142
      %p153 = scmp.eq.s32.totalorder %s23, 0
      %p154 = por %p152, %p153
      %p155 = scmp.ne.s32.totalorder %s141, %s142
      %p156 = scmp.eq.s32.totalorder %s24, 1
      %p157 = por %p155, %p156
      %p159 = scmp.ne.s32.totalorder %s142, %s158
      %p160 = scmp.eq.s32.totalorder %s24, 0
      %p161 = por %p159, %p160
      %p162 = scmp.le.s32.totalorder 1, %s18
      %p163 = scmp.lt.s32.totalorder %s18, 3
      %p164 = pnand %p162, %p163
      %p165 = pneg %p164
      // Predicated region
      $region9: #{tpu_custom_call.1} parent=5 // pred_check
        _
      $region10: #{tpu_custom_call.1} parent=5 // pred_check_branch
        %167 = sbr.rel (%p164) target = $region12
      $region11: #{tpu_custom_call.1} parent=5 // pred_region
        %s168 = ssub.s32 %s18, 1
        // Predicated region
        $region13: #{tpu_custom_call.1} parent=11 // pred_check
          %p169 = pneg %p65
        $region14: #{tpu_custom_call.1} parent=11 // pred_check_branch
          %171 = sbr.rel (%p169) target = $region16
        $region15: #{tpu_custom_call.1} parent=11 // pred_region
          %173 = vsyncadd [#allocation6], 0
          %s175 = sshll.u32 %s1, 4
          %s176 = int_to_ptr.hbm [resolvable:$true] %s175
          %s177 = sshll.u32 [#allocation5], 4
          %s178 = int_to_ptr.vmem [resolvable:$true] %s177
          %180 = dma.hbm_to_vmem [thread:$0]  %s176, 16, %s178, [#allocation6]
        $region16: #{tpu_custom_call.1} parent=11 // pred_fallthru
          _
        // Predicated region
        $region17: #{tpu_custom_call.1} parent=11 // pred_check
          %p181 = pneg %p86
        $region18: #{tpu_custom_call.1} parent=11 // pred_check_branch
          %183 = sbr.rel (%p181) target = $region20
        $region19: #{tpu_custom_call.1} parent=11 // pred_region
          _
        $region20: #{tpu_custom_call.1} parent=11 // pred_fallthru
          _
        // Predicated region
        $region21: #{tpu_custom_call.1} parent=11 // pred_check
          %p184 = pneg %p107
        $region22: #{tpu_custom_call.1} parent=11 // pred_check_branch
          %186 = sbr.rel (%p184) target = $region24
        $region23: #{tpu_custom_call.1} parent=11 // pred_region
          %188 = vsyncadd [#allocation6], 0
          %s189 = sshll.u32 %s3, 4
          %s190 = int_to_ptr.hbm [resolvable:$true] %s189
          %s191 = sshll.u32 [#allocation7], 4
          %s192 = int_to_ptr.vmem [resolvable:$true] %s191
          %197 = dma.hbm_to_vmem [thread:$0]  %s190, 256, %s192, [#allocation6], 64, 64, 4
        $region24: #{tpu_custom_call.1} parent=11 // pred_fallthru
          _
        // Predicated region
        $region25: #{tpu_custom_call.1} parent=11 // pred_check
          %p198 = pneg %p128
        $region26: #{tpu_custom_call.1} parent=11 // pred_check_branch
          %200 = sbr.rel (%p198) target = $region28
        $region27: #{tpu_custom_call.1} parent=11 // pred_region
          _
        $region28: #{tpu_custom_call.1} parent=11 // pred_fallthru
          _
      $region12: #{tpu_custom_call.1} parent=5 // pred_fallthru
        _
      %p201 = scmp.lt.s32.totalorder %s18, 2
      // Predicated region
      $region29: #{tpu_custom_call.1} parent=5 // pred_check
        %p202 = pneg %p201
      $region30: #{tpu_custom_call.1} parent=5 // pred_check_branch
        %204 = sbr.rel (%p202) target = $region32
      $region31: #{tpu_custom_call.1} parent=5 // pred_region
        // Predicated region
        $region33: #{tpu_custom_call.1} parent=31 // pred_check
          %p205 = pneg %p38
        $region34: #{tpu_custom_call.1} parent=31 // pred_check_branch
          %207 = sbr.rel (%p205) target = $region36
        $region35: #{tpu_custom_call.1} parent=31 // pred_region
          %s208 = sand.u32 %s28, 1
          %s209 = scalar_lea.sflag [#allocation3], %s208
          %s210 = sand.u32 %s28, 1
          %s211 = smul.addr %s210, 16
          %s212 = scalar_lea.vmem [#allocation2], %s211
          %s213 = smul.u32 2, %s18
          %215 = vsyncadd %s209, 0
          %s216 = smul.addr %s213, 8
          %s217 = scalar_lea.hbm %s0, %s216
          %s218 = sshll.u32 %s217, 4
          %s219 = int_to_ptr.hbm [resolvable:$true] %s218
          %s220 = sshll.u32 %s212, 4
          %s221 = int_to_ptr.vmem [resolvable:$true] %s220
          %226 = dma.hbm_to_vmem [thread:$0]  %s219, 256, %s221, %s209, 128, 128, 8
        $region36: #{tpu_custom_call.1} parent=31 // pred_fallthru
          _
      $region32: #{tpu_custom_call.1} parent=5 // pred_fallthru
        _
      %p227 = scmp.le.s32.totalorder 1, %s18
      %p228 = scmp.lt.s32.totalorder %s18, 3
      %p229 = pnand %p227, %p228
      %p230 = pneg %p229
      // Predicated region
      $region37: #{tpu_custom_call.1} parent=5 // pred_check
        _
      $region38: #{tpu_custom_call.1} parent=5 // pred_check_branch
        %232 = sbr.rel (%p229) target = $region40
      $region39: #{tpu_custom_call.1} parent=5 // pred_region
        %s233 = ssub.s32 %s18, 1
        %s234 = sand.u32 %s31, 1
        %s235 = scalar_lea.sflag [#allocation3], %s234
        %s236 = sand.u32 %s31, 1
        %s237 = smul.addr %s236, 16
        %s238 = scalar_lea.vmem [#allocation2], %s237
        // Predicated region
        $region41: #{tpu_custom_call.1} parent=39 // pred_check
          %p239 = pneg %p44
        $region42: #{tpu_custom_call.1} parent=39 // pred_check_branch
          %241 = sbr.rel (%p239) target = $region44
        $region43: #{tpu_custom_call.1} parent=39 // pred_region
          %243 = dma.done %s235, 256
        $region44: #{tpu_custom_call.1} parent=39 // pred_fallthru
          _
        // Predicated region
        $region45: #{tpu_custom_call.1} parent=39 // pred_check
          %p244 = pneg %p65
        $region46: #{tpu_custom_call.1} parent=39 // pred_check_branch
          %246 = sbr.rel (%p244) target = $region48
        $region47: #{tpu_custom_call.1} parent=39 // pred_region
          %248 = dma.done [#allocation6], 16
        $region48: #{tpu_custom_call.1} parent=39 // pred_fallthru
          _
        // Predicated region
        $region49: #{tpu_custom_call.1} parent=39 // pred_check
          %p249 = pneg %p107
        $region50: #{tpu_custom_call.1} parent=39 // pred_check_branch
          %251 = sbr.rel (%p249) target = $region52
        $region51: #{tpu_custom_call.1} parent=39 // pred_region
          %253 = dma.done [#allocation6], 256
        $region52: #{tpu_custom_call.1} parent=39 // pred_fallthru
          _
        %s254 = sand.u32 %s31, 1
        %s255 = scalar_lea.sflag [#allocation3], %s254
        %s256 = sand.u32 %s31, 1
        %s257 = smul.addr %s256, 16
        %s258 = scalar_lea.vmem [#allocation2], %s257
        %p259 = pneg %p44
        %p260 = pneg %p41
        %p261 = pneg %p65
        %p262 = pneg %p62
        %p263 = pneg %p86
        %p264 = pneg %p83
        %p265 = pneg %p107
        %p266 = pneg %p104
        %p267 = pneg %p128
        %p268 = pneg %p125
        %p269 = pneg %p154
        %p270 = pneg %p151
        %s271 = sand.u32 %s141, 1
        %s272 = scalar_lea.sflag [#allocation4], %s271
        %s273 = sand.u32 %s141, 1
        %s274 = smul.addr %s273, 16
        %s275 = scalar_lea.vmem [#allocation8], %s274
        %s276 = smul.u32 2, %s23
        %s277 = smul.u32 2, %s23
        %v279 = vld [vmem:[%s238] sm:$0xff]
        %v280 = vld [vmem:[%s238 + $0x8] sm:$0xff]
        %vm281 = vcmask 261120
        %v282 = vsel %vm281, %v279, 0.0
        %283 = vadd.xlane.f32.xlu0 %v282
        %v284 = vpop.xlane.xlu0 %283
        %v285 = vsel %vm281, %v280, 0.0
        %286 = vadd.xlane.f32.xlu0 %v285
        %v287 = vpop.xlane.xlu0 %286
        %v288 = vrcp.pop 32.0
        %v289 = vmul.f32 32.0, %v288
        %v290 = vsub.f32 1.0, %v289
        %v291 = vmul.f32 %v288, %v290
        %v292 = vadd.f32 %v288, %v291
        %vm293 = vweird.f32 %v288
        %v294 = vsel %vm293, %v288, %v292
        %v295 = vmul.f32 %v284, %v294
        %v296 = vmul.f32 %v287, %v294
        %v297 = vsub.f32 %v279, %v295
        %v298 = vsub.f32 %v280, %v296
        %v299 = vmul.f32 %v297, %v297
        %v300 = vmul.f32 %v298, %v298
        %v301 = vsel %vm281, %v299, 0.0
        %302 = vadd.xlane.f32.xlu0 %v301
        %v303 = vpop.xlane.xlu0 %302
        %v304 = vsel %vm281, %v300, 0.0
        %305 = vadd.xlane.f32.xlu0 %v304
        %v306 = vpop.xlane.xlu0 %305
        %v307 = vmul.f32 %v303, 0.032258064
        %v308 = vmul.f32 %v306, 0.032258064
        %v309 = vrsqrt.pop %v307
        %v310 = vmul.f32 %v309, %v307
        %v311 = vmul.f32 %v310, %v309
        %v312 = vmul.f32 0.5, %v311
        %v313 = vsub.f32 1.5, %v312
        %v314 = vmul.f32 %v309, %v313
        %v315 = vmul.f32 %v307, %v314
        %vm316 = vcmp.eq.f32.partialorder %v307, inf
        %v317 = vsel %vm316, %v307, %v315
        %vm318 = vcmp.eq.f32.partialorder %v307, 0.0
        %v319 = vand.u32 %v307, 2147483648
        %v320 = vsel %vm318, %v319, %v317
        %v321 = vrsqrt.pop %v308
        %v322 = vmul.f32 %v321, %v308
        %v323 = vmul.f32 %v322, %v321
        %v324 = vmul.f32 0.5, %v323
        %v325 = vsub.f32 1.5, %v324
        %v326 = vmul.f32 %v321, %v325
        %v327 = vmul.f32 %v308, %v326
        %vm328 = vcmp.eq.f32.partialorder %v308, inf
        %v329 = vsel %vm328, %v308, %v327
        %vm330 = vcmp.eq.f32.partialorder %v308, 0.0
        %v331 = vand.u32 %v308, 2147483648
        %v332 = vsel %vm330, %v331, %v329
        %v333 = vadd.f32 %v320, 1e-06
        %v334 = vadd.f32 %v332, 1e-06
        %v335 = vrcp.pop %v333
        %v336 = vmul.f32 %v333, %v335
        %v337 = vsub.f32 1.0, %v336
        %v338 = vmul.f32 %v335, %v337
        %v339 = vadd.f32 %v335, %v338
        %vm340 = vweird.f32 %v333
        %vm341 = vweird.f32 %v335
        %vm342 = vmor %vm340, %vm341
        %v343 = vsel %vm342, %v335, %v339
        %v344 = vand.u32 2147483647, %v333
        %vm345 = vcmp.eq.f32.partialorder %v344, 8.507059e+37
        %v346 = vand.u32 %v333, 2147483648
        %v347 = vor.u32 1.1754944e-38, %v346
        %v348 = vsel %vm345, %v347, %v343
        %v349 = vrcp.pop %v334
        %v350 = vmul.f32 %v334, %v349
        %v351 = vsub.f32 1.0, %v350
        %v352 = vmul.f32 %v349, %v351
        %v353 = vadd.f32 %v349, %v352
        %vm354 = vweird.f32 %v334
        %vm355 = vweird.f32 %v349
        %vm356 = vmor %vm354, %vm355
        %v357 = vsel %vm356, %v349, %v353
        %v358 = vand.u32 2147483647, %v334
        %vm359 = vcmp.eq.f32.partialorder %v358, 8.507059e+37
        %v360 = vand.u32 %v334, 2147483648
        %v361 = vor.u32 1.1754944e-38, %v360
        %v362 = vsel %vm359, %v361, %v357
        %v363 = vld [vmem:[#allocation5] sm:$0x1]
        %v365 = vperm.slane %v363, 0
        %v367 = vmul.f32 %v365, %v348
        %v368 = vmul.f32 %v365, %v362
        %v369 = vmul.f32 %v297, %v367
        %v370 = vmul.f32 %v298, %v368
        %v371 = vld [vmem:[%s2] sm:$0x1]
        %v373 = vperm.slane %v371, 0
        %v375 = vadd.f32 %v369, %v373
        %v376 = vadd.f32 %v370, %v373
        %v377 = vpack.c.bf16 %v376, %v375
        %v378 = vld [vmem:[#allocation7] sm:$0xf]
        %v379 = vld [vmem:[#allocation7 + $0x4] sm:$0xf]
        %v380 = vld [vmem:[#allocation7 + $0x8] sm:$0xf]
        %v381 = vld [vmem:[#allocation7 + $0xc] sm:$0xf]
        %v382 = vld [vmem:[%s4] sm:$0x1]
        %v384 = vperm.slane %v382, 0
        %v390 = vunpack.c.l.b16 %v378
        %v391 = vunpack.c.l.b16 %v379
        %v392 = vunpack.c.l.b16 %v380
        %v393 = vunpack.c.l.b16 %v381
        %v394 = vpack.c.b16 %v391, %v390
        %v395 = vpack.c.b16 %v393, %v392
        %v399 = vsel %vm281, %v377, 0
        %401 = vmatpush.bf16.msra.mxu0 0
        %402 = vmatpush.bf16.msra.mxu0 0
        %403 = vmatpush.bf16.msra.mxu0 0
        %404 = vmatpush.bf16.msra.mxu0 0
        %405 = vmatpush.bf16.msra.mxu0 0
        %406 = vmatpush.bf16.msra.mxu0 0
        %407 = vmatpush.bf16.msra.mxu0 %v395
        %408 = vmatpush.bf16.msra.mxu0 %v394
        %409 = vmatmul.bf16.gmra.mxu0 %v399
        %v410 = vpop.f32.mrf.mxu0
        %v411 = vadd.f32 %v384, %v410
        %v412 = vpop.f32.mrf.mxu0
        %v413 = vadd.f32 %v384, %v412
        %414 = vdwg.mxu0
        %v415 = vadd.f32 %v279, %v411
        %v416 = vadd.f32 %v280, %v413
        %417 = vst.msk [vmem:[%s275] sm:$0xff] %vm281, %v415
        %418 = vst.msk [vmem:[%s275 + $0x8] sm:$0xff] %vm281, %v416
        %s419 = sand.u32 %s141, 1
        %s420 = scalar_lea.sflag [#allocation4], %s419
        %s421 = sand.u32 %s141, 1
        %s422 = smul.addr %s421, 16
        %s423 = scalar_lea.vmem [#allocation8], %s422
        // Predicated region
        $region53: #{tpu_custom_call.1} parent=39 // pred_check
          %p424 = pneg %p151
        $region54: #{tpu_custom_call.1} parent=39 // pred_check_branch
          %426 = sbr.rel (%p424) target = $region56
        $region55: #{tpu_custom_call.1} parent=39 // pred_region
          %s427 = smul.u32 2, %s23
          %429 = vsyncadd %s420, 0
          %s430 = smul.addr %s427, 8
          %s431 = scalar_lea.hbm %s5, %s430
          %s432 = sshll.u32 %s423, 4
          %s433 = int_to_ptr.vmem [resolvable:$true] %s432
          %s434 = sshll.u32 %s431, 4
          %s435 = int_to_ptr.hbm [resolvable:$true] %s434
          %440 = dma.vmem_to_hbm [thread:$0]  %s433, 256, %s435, %s420, 128, 128, 8
        $region56: #{tpu_custom_call.1} parent=39 // pred_fallthru
          _
      $region40: #{tpu_custom_call.1} parent=5 // pred_fallthru
        _
      %p441 = scmp.le.s32.totalorder 2, %s18
      // Predicated region
      $region57: #{tpu_custom_call.1} parent=5 // pred_check
        %p442 = pneg %p441
      $region58: #{tpu_custom_call.1} parent=5 // pred_check_branch
        %444 = sbr.rel (%p442) target = $region60
      $region59: #{tpu_custom_call.1} parent=5 // pred_region
        %s445 = ssub.s32 %s18, 2
        // Predicated region
        $region61: #{tpu_custom_call.1} parent=59 // pred_check
          %p446 = pneg %p157
        $region62: #{tpu_custom_call.1} parent=59 // pred_check_branch
          %448 = sbr.rel (%p446) target = $region64
        $region63: #{tpu_custom_call.1} parent=59 // pred_region
          %s449 = sand.u32 %s142, 1
          %s450 = scalar_lea.sflag [#allocation4], %s449
          %s451 = sand.u32 %s142, 1
          %s452 = smul.addr %s451, 16
          %s453 = scalar_lea.vmem [#allocation8], %s452
          %455 = dma.done %s450, 256
        $region64: #{tpu_custom_call.1} parent=59 // pred_fallthru
          _
      $region60: #{tpu_custom_call.1} parent=5 // pred_fallthru
        _
    $region6: #{tpu_custom_call.1} parent=1 // loop_footer
      %s22 = sadd.s32 1, %s18
    $region7: #{tpu_custom_call.1} parent=1 // loop_footer_branch
      %17 = sbr.rel target = $region3
    $region8: #{tpu_custom_call.1} parent=1 // loop_exit
      _
    %456 = vsyncpa [#allocation3], 1
    %s457 = scalar_lea.sflag [#allocation3], 1
    %458 = vsyncpa %s457, 1
    %459 = vsyncpa [#allocation6], 1
    %460 = vsyncpa [#allocation4], 1
    %s461 = scalar_lea.sflag [#allocation4], 1
    %462 = vsyncpa %s461, 1

// kernel: tpu_custom_call.1
$region0: #{tpu_custom_call.1}
  #allocation0 [shape = 'u32[]', space=smem, size = 0x4, offset = 0x4, fixed_abs, tag = 'smem constant byte address 0x4 - core index']
  #allocation1 [shape = 'u32[72,128]{1,0:T(1,128)}', space=vmem, size = 0x9000, scoped, tag = 'internal scratch']
  %s0 = inlined_call_operand.hbm [shape: f32[32,32], index: 0, kind: input, shape index: {}]
  %s1 = inlined_call_operand.hbm [shape: f32[1,32], index: 1, kind: input, shape index: {}]
  %s2 = inlined_call_operand.vmem [shape: f32[1,32], index: 2, kind: input, shape index: {}]
  %s3 = inlined_call_operand.hbm [shape: bf16[32,32], index: 3, kind: input, shape index: {}]
  %s4 = inlined_call_operand.vmem [shape: f32[1,32], index: 4, kind: input, shape index: {}]
  %s5 = inlined_call_operand.hbm [shape: f32[32,32], index: 5, kind: output, shape index: {}]
  %s6 = sld [smem:[#allocation0]]
  $region65: #{tpu_custom_call.1} parent=0
    _
  %s8 = ssub.s32 1, %s6
  %s9 = scalar_select 0, %s8, %s6
  $region1: #{tpu_custom_call.1} parent=0
    #allocation2 [shape = 'u8[16384]{0}', space=vmem, size = 0x4000, scoped, tag = 'input window, operand 0']
    #allocation3 [shape = 's32[2]{0}', space=sflag, size = 0x8, scoped, tag = 'scoped memory for tpu_custom_call.1']
    #allocation4 [shape = 's32[2]{0}', space=sflag, size = 0x8, scoped, tag = 'scoped memory for tpu_custom_call.1']
    #allocation5 [shape = 'u8[512]{0}', space=vmem, size = 0x400, scoped, tag = 'input window, operand 1, single buffered']
    #allocation6 [shape = 's32[1]{0}', space=sflag, size = 0x4, scoped, tag = 'scoped memory for tpu_custom_call.1']
    #allocation7 [shape = 'u8[8192]{0}', space=vmem, size = 0x2000, scoped, tag = 'input window, operand 3, single buffered']
    #allocation8 [shape = 'u8[16384]{0}', space=vmem, size = 0x4000, scoped, tag = 'output window, operand 0']
    %10 = vsyncpa [#allocation3], 0
    %s11 = scalar_lea.sflag [#allocation3], 1
    %12 = vsyncpa %s11, 0
    %13 = vsyncpa [#allocation6], 0
    %14 = vsyncpa [#allocation4], 0
    %s15 = scalar_lea.sflag [#allocation4], 1
    %16 = vsyncpa %s15, 0
    loop: start=0, step=1, limit=4
    $region2: #{tpu_custom_call.1} parent=1 // loop_pre_header
      _
    $region3: #{tpu_custom_call.1} parent=1 // loop_header
      %s18 = sphi 0, %s22
      %p19 = scmp.ge.s32.totalorder %s18, 4
      %s28 = sphi 0, %s30
      %s31 = sphi 0, %s28
      %s32 = sphi 0, %s31
      %s48 = sphi 0, %s32
      %s52 = sphi 0, %s52
      %s54 = sphi 0, %s52
      %s55 = sphi 0, %s54
      %s69 = sphi 0, %s55
      %s73 = sphi 0, %s73
      %s75 = sphi 0, %s73
      %s76 = sphi 0, %s75
      %s90 = sphi 0, %s76
      %s94 = sphi 0, %s94
      %s96 = sphi 0, %s94
      %s97 = sphi 0, %s96
      %s111 = sphi 0, %s97
      %s115 = sphi 0, %s115
      %s117 = sphi 0, %s115
      %s118 = sphi 0, %s117
      %s132 = sphi 0, %s118
      %s138 = sphi 0, %s140
      %s141 = sphi 0, %s138
      %s142 = sphi 0, %s141
      %s158 = sphi 0, %s142
    $region4: #{tpu_custom_call.1} parent=1 // loop_header_branch
      %21 = sbr.rel (%p19) target = $region8
    $region5: #{tpu_custom_call.1} parent=1 // loop_body
      %s23 = ssub.s32 %s18, 1
      %s24 = ssub.s32 %s18, 2
      %s25 = sadd.s32 %s18, 1
      %s26 = ssub.s32 %s18, %s25
      %p27 = scmp.eq.s32.totalorder %s26, 0
      %s29 = sadd.s32 %s28, 1
      %s30 = scalar_select %p27, %s28, %s29
      %p33 = pneg %p27
      %p34 = scmp.eq.s32.totalorder %s18, 1
      %p35 = por %p33, %p34
      %p36 = scmp.ne.s32.totalorder %s28, %s31
      %p37 = scmp.eq.s32.totalorder %s18, 0
      %p38 = por %p36, %p37
      %p39 = scmp.ne.s32.totalorder %s28, %s31
      %p40 = scmp.eq.s32.totalorder %s23, 1
      %p41 = por %p39, %p40
      %p42 = scmp.ne.s32.totalorder %s31, %s32
      %p43 = scmp.eq.s32.totalorder %s23, 0
      %p44 = por %p42, %p43
      %p45 = scmp.ne.s32.totalorder %s31, %s32
      %p46 = scmp.eq.s32.totalorder %s24, 1
      %p47 = por %p45, %p46
      %p49 = scmp.ne.s32.totalorder %s32, %s48
      %p50 = scmp.eq.s32.totalorder %s24, 0
      %p51 = por %p49, %p50
      %s53 = sadd.s32 %s52, 1
      %p56 = scmp.eq.s32.totalorder %s18, 1
      %p57 = scmp.ne.s32.totalorder %s52, %s54
      %p58 = scmp.eq.s32.totalorder %s18, 0
      %p59 = por %p57, %p58
      %p60 = scmp.ne.s32.totalorder %s52, %s54
      %p61 = scmp.eq.s32.totalorder %s23, 1
      %p62 = por %p60, %p61
      %p63 = scmp.ne.s32.totalorder %s54, %s55
      %p64 = scmp.eq.s32.totalorder %s23, 0
      %p65 = por %p63, %p64
      %p66 = scmp.ne.s32.totalorder %s54, %s55
      %p67 = scmp.eq.s32.totalorder %s24, 1
      %p68 = por %p66, %p67
      %p70 = scmp.ne.s32.totalorder %s55, %s69
      %p71 = scmp.eq.s32.totalorder %s24, 0
      %p72 = por %p70, %p71
      %s74 = sadd.s32 %s73, 1
      %p77 = scmp.eq.s32.totalorder %s18, 1
      %p78 = scmp.ne.s32.totalorder %s73, %s75
      %p79 = scmp.eq.s32.totalorder %s18, 0
      %p80 = por %p78, %p79
      %p81 = scmp.ne.s32.totalorder %s73, %s75
      %p82 = scmp.eq.s32.totalorder %s23, 1
      %p83 = por %p81, %p82
      %p84 = scmp.ne.s32.totalorder %s75, %s76
      %p85 = scmp.eq.s32.totalorder %s23, 0
      %p86 = por %p84, %p85
      %p87 = scmp.ne.s32.totalorder %s75, %s76
      %p88 = scmp.eq.s32.totalorder %s24, 1
      %p89 = por %p87, %p88
      %p91 = scmp.ne.s32.totalorder %s76, %s90
      %p92 = scmp.eq.s32.totalorder %s24, 0
      %p93 = por %p91, %p92
      %s95 = sadd.s32 %s94, 1
      %p98 = scmp.eq.s32.totalorder %s18, 1
      %p99 = scmp.ne.s32.totalorder %s94, %s96
      %p100 = scmp.eq.s32.totalorder %s18, 0
      %p101 = por %p99, %p100
      %p102 = scmp.ne.s32.totalorder %s94, %s96
      %p103 = scmp.eq.s32.totalorder %s23, 1
      %p104 = por %p102, %p103
      %p105 = scmp.ne.s32.totalorder %s96, %s97
      %p106 = scmp.eq.s32.totalorder %s23, 0
      %p107 = por %p105, %p106
      %p108 = scmp.ne.s32.totalorder %s96, %s97
      %p109 = scmp.eq.s32.totalorder %s24, 1
      %p110 = por %p108, %p109
      %p112 = scmp.ne.s32.totalorder %s97, %s111
      %p113 = scmp.eq.s32.totalorder %s24, 0
      %p114 = por %p112, %p113
      %s116 = sadd.s32 %s115, 1
      %p119 = scmp.eq.s32.totalorder %s18, 1
      %p120 = scmp.ne.s32.totalorder %s115, %s117
      %p121 = scmp.eq.s32.totalorder %s18, 0
      %p122 = por %p120, %p121
      %p123 = scmp.ne.s32.totalorder %s115, %s117
      %p124 = scmp.eq.s32.totalorder %s23, 1
      %p125 = por %p123, %p124
      %p126 = scmp.ne.s32.totalorder %s117, %s118
      %p127 = scmp.eq.s32.totalorder %s23, 0
      %p128 = por %p126, %p127
      %p129 = scmp.ne.s32.totalorder %s117, %s118
      %p130 = scmp.eq.s32.totalorder %s24, 1
      %p131 = por %p129, %p130
      %p133 = scmp.ne.s32.totalorder %s118, %s132
      %p134 = scmp.eq.s32.totalorder %s24, 0
      %p135 = por %p133, %p134
      %s136 = ssub.s32 %s18, %s25
      %p137 = scmp.eq.s32.totalorder %s136, 0
      %s139 = sadd.s32 %s138, 1
      %s140 = scalar_select %p137, %s138, %s139
      %p143 = pneg %p137
      %p144 = scmp.eq.s32.totalorder %s18, 1
      %p145 = por %p143, %p144
      %p146 = scmp.ne.s32.totalorder %s138, %s141
      %p147 = scmp.eq.s32.totalorder %s18, 0
      %p148 = por %p146, %p147
      %p149 = scmp.ne.s32.totalorder %s138, %s141
      %p150 = scmp.eq.s32.totalorder %s23, 1
      %p151 = por %p149, %p150
      %p152 = scmp.ne.s32.totalorder %s141, %s142
      %p153 = scmp.eq.s32.totalorder %s23, 0
      %p154 = por %p152, %p153
      %p155 = scmp.ne.s32.totalorder %s141, %s142
      %p156 = scmp.eq.s32.totalorder %s24, 1
      %p157 = por %p155, %p156
      %p159 = scmp.ne.s32.totalorder %s142, %s158
      %p160 = scmp.eq.s32.totalorder %s24, 0
      %p161 = por %p159, %p160
      %p162 = scmp.le.s32.totalorder 1, %s18
      %p163 = scmp.lt.s32.totalorder %s18, 3
      %p164 = pnand %p162, %p163
      %p165 = pneg %p164
      // Predicated region
      $region9: #{tpu_custom_call.1} parent=5 // pred_check
        _
      $region10: #{tpu_custom_call.1} parent=5 // pred_check_branch
        %167 = sbr.rel (%p164) target = $region12
      $region11: #{tpu_custom_call.1} parent=5 // pred_region
        %s168 = ssub.s32 %s18, 1
        // Predicated region
        $region13: #{tpu_custom_call.1} parent=11 // pred_check
          %p169 = pneg %p65
        $region14: #{tpu_custom_call.1} parent=11 // pred_check_branch
          %171 = sbr.rel (%p169) target = $region16
        $region15: #{tpu_custom_call.1} parent=11 // pred_region
          %173 = vsyncadd [#allocation6], 0
          %s175 = sshll.u32 %s1, 4
          %s176 = int_to_ptr.hbm [resolvable:$true] %s175
          %s177 = sshll.u32 [#allocation5], 4
          %s178 = int_to_ptr.vmem [resolvable:$true] %s177
          %180 = dma.hbm_to_vmem [thread:$0]  %s176, 16, %s178, [#allocation6]
        $region16: #{tpu_custom_call.1} parent=11 // pred_fallthru
          _
        // Predicated region
        $region17: #{tpu_custom_call.1} parent=11 // pred_check
          %p181 = pneg %p86
        $region18: #{tpu_custom_call.1} parent=11 // pred_check_branch
          %183 = sbr.rel (%p181) target = $region20
        $region19: #{tpu_custom_call.1} parent=11 // pred_region
          _
        $region20: #{tpu_custom_call.1} parent=11 // pred_fallthru
          _
        // Predicated region
        $region21: #{tpu_custom_call.1} parent=11 // pred_check
          %p184 = pneg %p107
        $region22: #{tpu_custom_call.1} parent=11 // pred_check_branch
          %186 = sbr.rel (%p184) target = $region24
        $region23: #{tpu_custom_call.1} parent=11 // pred_region
          %188 = vsyncadd [#allocation6], 0
          %s189 = sshll.u32 %s3, 4
          %s190 = int_to_ptr.hbm [resolvable:$true] %s189
          %s191 = sshll.u32 [#allocation7], 4
          %s192 = int_to_ptr.vmem [resolvable:$true] %s191
          %197 = dma.hbm_to_vmem [thread:$0]  %s190, 256, %s192, [#allocation6], 64, 64, 4
        $region24: #{tpu_custom_call.1} parent=11 // pred_fallthru
          _
        // Predicated region
        $region25: #{tpu_custom_call.1} parent=11 // pred_check
          %p198 = pneg %p128
        $region26: #{tpu_custom_call.1} parent=11 // pred_check_branch
          %200 = sbr.rel (%p198) target = $region28
        $region27: #{tpu_custom_call.1} parent=11 // pred_region
          _
        $region28: #{tpu_custom_call.1} parent=11 // pred_fallthru
          _
      $region12: #{tpu_custom_call.1} parent=5 // pred_fallthru
        _
      %p201 = scmp.lt.s32.totalorder %s18, 2
      // Predicated region
      $region29: #{tpu_custom_call.1} parent=5 // pred_check
        %p202 = pneg %p201
      $region30: #{tpu_custom_call.1} parent=5 // pred_check_branch
        %204 = sbr.rel (%p202) target = $region32
      $region31: #{tpu_custom_call.1} parent=5 // pred_region
        // Predicated region
        $region33: #{tpu_custom_call.1} parent=31 // pred_check
          %p205 = pneg %p38
        $region34: #{tpu_custom_call.1} parent=31 // pred_check_branch
          %207 = sbr.rel (%p205) target = $region36
        $region35: #{tpu_custom_call.1} parent=31 // pred_region
          %s208 = sand.u32 %s28, 1
          %s209 = scalar_lea.sflag [#allocation3], %s208
          %s210 = sand.u32 %s28, 1
          %s211 = smul.addr %s210, 16
          %s212 = scalar_lea.vmem [#allocation2], %s211
          %s213 = smul.u32 2, %s18
          %215 = vsyncadd %s209, 0
          %s216 = smul.addr %s213, 8
          %s217 = scalar_lea.hbm %s0, %s216
          %s218 = sshll.u32 %s217, 4
          %s219 = int_to_ptr.hbm [resolvable:$true] %s218
          %s220 = sshll.u32 %s212, 4
          %s221 = int_to_ptr.vmem [resolvable:$true] %s220
          %226 = dma.hbm_to_vmem [thread:$0]  %s219, 256, %s221, %s209, 128, 128, 8
        $region36: #{tpu_custom_call.1} parent=31 // pred_fallthru
          _
      $region32: #{tpu_custom_call.1} parent=5 // pred_fallthru
        _
      %p227 = scmp.le.s32.totalorder 1, %s18
      %p228 = scmp.lt.s32.totalorder %s18, 3
      %p229 = pnand %p227, %p228
      %p230 = pneg %p229
      // Predicated region
      $region37: #{tpu_custom_call.1} parent=5 // pred_check
        _
      $region38: #{tpu_custom_call.1} parent=5 // pred_check_branch
        %232 = sbr.rel (%p229) target = $region40
      $region39: #{tpu_custom_call.1} parent=5 // pred_region
        %s233 = ssub.s32 %s18, 1
        %s234 = sand.u32 %s31, 1
        %s235 = scalar_lea.sflag [#allocation3], %s234
        %s236 = sand.u32 %s31, 1
        %s237 = smul.addr %s236, 16
        %s238 = scalar_lea.vmem [#allocation2], %s237
        // Predicated region
        $region41: #{tpu_custom_call.1} parent=39 // pred_check
          %p239 = pneg %p44
        $region42: #{tpu_custom_call.1} parent=39 // pred_check_branch
          %241 = sbr.rel (%p239) target = $region44
        $region43: #{tpu_custom_call.1} parent=39 // pred_region
          %243 = dma.done %s235, 256
        $region44: #{tpu_custom_call.1} parent=39 // pred_fallthru
          _
        // Predicated region
        $region45: #{tpu_custom_call.1} parent=39 // pred_check
          %p244 = pneg %p65
        $region46: #{tpu_custom_call.1} parent=39 // pred_check_branch
          %246 = sbr.rel (%p244) target = $region48
        $region47: #{tpu_custom_call.1} parent=39 // pred_region
          %248 = dma.done [#allocation6], 16
        $region48: #{tpu_custom_call.1} parent=39 // pred_fallthru
          _
        // Predicated region
        $region49: #{tpu_custom_call.1} parent=39 // pred_check
          %p249 = pneg %p107
        $region50: #{tpu_custom_call.1} parent=39 // pred_check_branch
          %251 = sbr.rel (%p249) target = $region52
        $region51: #{tpu_custom_call.1} parent=39 // pred_region
          %253 = dma.done [#allocation6], 256
        $region52: #{tpu_custom_call.1} parent=39 // pred_fallthru
          _
        %s254 = sand.u32 %s31, 1
        %s255 = scalar_lea.sflag [#allocation3], %s254
        %s256 = sand.u32 %s31, 1
        %s257 = smul.addr %s256, 16
        %s258 = scalar_lea.vmem [#allocation2], %s257
        %p259 = pneg %p44
        %p260 = pneg %p41
        %p261 = pneg %p65
        %p262 = pneg %p62
        %p263 = pneg %p86
        %p264 = pneg %p83
        %p265 = pneg %p107
        %p266 = pneg %p104
        %p267 = pneg %p128
        %p268 = pneg %p125
        %p269 = pneg %p154
        %p270 = pneg %p151
        %s271 = sand.u32 %s141, 1
        %s272 = scalar_lea.sflag [#allocation4], %s271
        %s273 = sand.u32 %s141, 1
        %s274 = smul.addr %s273, 16
        %s275 = scalar_lea.vmem [#allocation8], %s274
        %s276 = smul.u32 2, %s23
        %s277 = smul.u32 2, %s23
        %v279 = vld [vmem:[%s238] sm:$0xff]
        %v280 = vld [vmem:[%s238 + $0x8] sm:$0xff]
        %vm281 = vcmask 261120
        %v282 = vsel %vm281, %v279, 0.0
        %283 = vadd.xlane.f32.xlu0 %v282
        %v284 = vpop.xlane.xlu0 %283
        %v285 = vsel %vm281, %v280, 0.0
        %286 = vadd.xlane.f32.xlu0 %v285
        %v287 = vpop.xlane.xlu0 %286
        %v288 = vrcp.pop 32.0
        %v289 = vmul.f32 32.0, %v288
        %v290 = vsub.f32 1.0, %v289
        %v291 = vmul.f32 %v288, %v290
        %v292 = vadd.f32 %v288, %v291
        %vm293 = vweird.f32 %v288
        %v294 = vsel %vm293, %v288, %v292
        %v295 = vmul.f32 %v284, %v294
        %v296 = vmul.f32 %v287, %v294
        %v297 = vsub.f32 %v279, %v295
        %v298 = vsub.f32 %v280, %v296
        %v299 = vmul.f32 %v297, %v297
        %v300 = vmul.f32 %v298, %v298
        %v301 = vsel %vm281, %v299, 0.0
        %302 = vadd.xlane.f32.xlu0 %v301
        %v303 = vpop.xlane.xlu0 %302
        %v304 = vsel %vm281, %v300, 0.0
        %305 = vadd.xlane.f32.xlu0 %v304
        %v306 = vpop.xlane.xlu0 %305
        %v307 = vmul.f32 %v303, 0.032258064
        %v308 = vmul.f32 %v306, 0.032258064
        %v309 = vrsqrt.pop %v307
        %v310 = vmul.f32 %v309, %v307
        %v311 = vmul.f32 %v310, %v309
        %v312 = vmul.f32 0.5, %v311
        %v313 = vsub.f32 1.5, %v312
        %v314 = vmul.f32 %v309, %v313
        %v315 = vmul.f32 %v307, %v314
        %vm316 = vcmp.eq.f32.partialorder %v307, inf
        %v317 = vsel %vm316, %v307, %v315
        %vm318 = vcmp.eq.f32.partialorder %v307, 0.0
        %v319 = vand.u32 %v307, 2147483648
        %v320 = vsel %vm318, %v319, %v317
        %v321 = vrsqrt.pop %v308
        %v322 = vmul.f32 %v321, %v308
        %v323 = vmul.f32 %v322, %v321
        %v324 = vmul.f32 0.5, %v323
        %v325 = vsub.f32 1.5, %v324
        %v326 = vmul.f32 %v321, %v325
        %v327 = vmul.f32 %v308, %v326
        %vm328 = vcmp.eq.f32.partialorder %v308, inf
        %v329 = vsel %vm328, %v308, %v327
        %vm330 = vcmp.eq.f32.partialorder %v308, 0.0
        %v331 = vand.u32 %v308, 2147483648
        %v332 = vsel %vm330, %v331, %v329
        %v333 = vadd.f32 %v320, 1e-06
        %v334 = vadd.f32 %v332, 1e-06
        %v335 = vrcp.pop %v333
        %v336 = vmul.f32 %v333, %v335
        %v337 = vsub.f32 1.0, %v336
        %v338 = vmul.f32 %v335, %v337
        %v339 = vadd.f32 %v335, %v338
        %vm340 = vweird.f32 %v333
        %vm341 = vweird.f32 %v335
        %vm342 = vmor %vm340, %vm341
        %v343 = vsel %vm342, %v335, %v339
        %v344 = vand.u32 2147483647, %v333
        %vm345 = vcmp.eq.f32.partialorder %v344, 8.507059e+37
        %v346 = vand.u32 %v333, 2147483648
        %v347 = vor.u32 1.1754944e-38, %v346
        %v348 = vsel %vm345, %v347, %v343
        %v349 = vrcp.pop %v334
        %v350 = vmul.f32 %v334, %v349
        %v351 = vsub.f32 1.0, %v350
        %v352 = vmul.f32 %v349, %v351
        %v353 = vadd.f32 %v349, %v352
        %vm354 = vweird.f32 %v334
        %vm355 = vweird.f32 %v349
        %vm356 = vmor %vm354, %vm355
        %v357 = vsel %vm356, %v349, %v353
        %v358 = vand.u32 2147483647, %v334
        %vm359 = vcmp.eq.f32.partialorder %v358, 8.507059e+37
        %v360 = vand.u32 %v334, 2147483648
        %v361 = vor.u32 1.1754944e-38, %v360
        %v362 = vsel %vm359, %v361, %v357
        %v363 = vld [vmem:[#allocation5] sm:$0x1]
        %v365 = vperm.slane %v363, 0
        %v367 = vmul.f32 %v365, %v348
        %v368 = vmul.f32 %v365, %v362
        %v369 = vmul.f32 %v297, %v367
        %v370 = vmul.f32 %v298, %v368
        %v371 = vld [vmem:[%s2] sm:$0x1]
        %v373 = vperm.slane %v371, 0
        %v375 = vadd.f32 %v369, %v373
        %v376 = vadd.f32 %v370, %v373
        %v377 = vpack.c.bf16 %v376, %v375
        %v378 = vld [vmem:[#allocation7] sm:$0xf]
        %v379 = vld [vmem:[#allocation7 + $0x4] sm:$0xf]
        %v380 = vld [vmem:[#allocation7 + $0x8] sm:$0xf]
        %v381 = vld [vmem:[#allocation7 + $0xc] sm:$0xf]
        %v382 = vld [vmem:[%s4] sm:$0x1]
        %v384 = vperm.slane %v382, 0
        %v390 = vunpack.c.l.b16 %v378
        %v391 = vunpack.c.l.b16 %v379
        %v392 = vunpack.c.l.b16 %v380
        %v393 = vunpack.c.l.b16 %v381
        %v394 = vpack.c.b16 %v391, %v390
        %v395 = vpack.c.b16 %v393, %v392
        %v399 = vsel %vm281, %v377, 0
        %401 = vmatpush.bf16.msra.mxu0 0
        %402 = vmatpush.bf16.msra.mxu0 0
        %403 = vmatpush.bf16.msra.mxu0 0
        %404 = vmatpush.bf16.msra.mxu0 0
        %405 = vmatpush.bf16.msra.mxu0 0
        %406 = vmatpush.bf16.msra.mxu0 0
        %407 = vmatpush.bf16.msra.mxu0 %v395
        %408 = vmatpush.bf16.msra.mxu0 %v394
        %409 = vmatmul.bf16.gmra.mxu0 %v399
        %v410 = vpop.f32.mrf.mxu0
        %v411 = vadd.f32 %v384, %v410
        %v412 = vpop.f32.mrf.mxu0
        %v413 = vadd.f32 %v384, %v412
        %414 = vdwg.mxu0
        %v415 = vadd.f32 %v279, %v411
        %v416 = vadd.f32 %v280, %v413
        %417 = vst.msk [vmem:[%s275] sm:$0xff] %vm281, %v415
        %418 = vst.msk [vmem:[%s275 + $0x8] sm:$0xff] %vm281, %v416
        %s419 = sand.u32 %s141, 1
        %s420 = scalar_lea.sflag [#allocation4], %s419
        %s421 = sand.u32 %s141, 1
        %s422 = smul.addr %s421, 16
        %s423 = scalar_lea.vmem [#allocation8], %s422
        // Predicated region
        $region53: #{tpu_custom_call.1} parent=39 // pred_check
          %p424 = pneg %p151
        $region54: #{tpu_custom_call.1} parent=39 // pred_check_branch
          %426 = sbr.rel (%p424) target = $region56
        $region55: #{tpu_custom_call.1} parent=39 // pred_region
          %s427 = smul.u32 2, %s23
          %429 = vsyncadd %s420, 0
          %s430 = smul.addr %s427, 8
          %s431 = scalar_lea.hbm %s5, %s430
          %s432 = sshll.u32 %s423, 4
          %s433 = int_to_ptr.vmem [resolvable:$true] %s432
          %s434 = sshll.u32 %s431, 4
          %s435 = int_to_ptr.hbm [resolvable:$true] %s434
          %440 = dma.vmem_to_hbm [thread:$0]  %s433, 256, %s435, %s420, 128, 128, 8
        $region56: #{tpu_custom_call.1} parent=39 // pred_fallthru
          _
      $region40: #{tpu_custom_call.1} parent=5 // pred_fallthru
        _
      %p441 = scmp.le.s32.totalorder 2, %s18
      // Predicated region
      $region57: #{tpu_custom_call.1} parent=5 // pred_check
        %p442 = pneg %p441
      $region58: #{tpu_custom_call.1} parent=5 // pred_check_branch
        %444 = sbr.rel (%p442) target = $region60
      $region59: #{tpu_custom_call.1} parent=5 // pred_region
        %s445 = ssub.s32 %s18, 2
        // Predicated region
        $region61: #{tpu_custom_call.1} parent=59 // pred_check
          %p446 = pneg %p157
        $region62: #{tpu_custom_call.1} parent=59 // pred_check_branch
          %448 = sbr.rel (%p446) target = $region64
        $region63: #{tpu_custom_call.1} parent=59 // pred_region
          %s449 = sand.u32 %s142, 1
          %s450 = scalar_lea.sflag [#allocation4], %s449
          %s451 = sand.u32 %s142, 1
          %s452 = smul.addr %s451, 16
          %s453 = scalar_lea.vmem [#allocation8], %s452
          %455 = dma.done %s450, 256
        $region64: #{tpu_custom_call.1} parent=59 // pred_fallthru
          _
      $region60: #{tpu_custom_call.1} parent=5 // pred_fallthru
        _
    $region6: #{tpu_custom_call.1} parent=1 // loop_footer
      %s22 = sadd.s32 1, %s18
    $region7: #{tpu_custom_call.1} parent=1 // loop_footer_branch
      %17 = sbr.rel target = $region3
    $region8: #{tpu_custom_call.1} parent=1 // loop_exit
      _
    %456 = vsyncpa [#allocation3], 1
    %s457 = scalar_lea.sflag [#allocation3], 1
    %458 = vsyncpa %s457, 1
    %459 = vsyncpa [#allocation6], 1
    %460 = vsyncpa [#allocation4], 1
    %s461 = scalar_lea.sflag [#allocation4], 1
    %462 = vsyncpa %s461, 1

</llo_original>
